<compile_context>
chip_gen: v5e
topology: v5e:2x2
jax: 0.10.0
libtpu: 0.0.40
codegen_flags: <defaults>
</compile_context>

<pallas_src>
import jax
import jax.numpy as jnp
from jax.experimental import pallas as pl
from jax.experimental.pallas import tpu as pltpu


def _gcn_agg_elu_kernel(adj_ref, x_ref, out_ref):
    # adj_ref: (C, C); x_ref / out_ref: (Fblk, C, S)  (batch dim squeezed by BlockSpec)
    adj = adj_ref[...]  # loaded once per grid step, hoisted out of the loop

    def per_filter(f, carry):
        # out[f, c, s] = elu( sum_e adj[c, e] * x[f, e, s] )  — one MXU matmul per filter
        agg = jnp.dot(adj, x_ref[f], preferred_element_type=jnp.float32)
        # ELU (alpha = 1): clamp before exp so the positive branch never feeds the EUP.
        neg = jnp.exp(jnp.minimum(agg, 0.0)) - 1.0
        out_ref[f] = jnp.where(agg > 0, agg, neg).astype(out_ref.dtype)
        return carry

    jax.lax.fori_loop(0, x_ref.shape[0], per_filter, 0)


def _auto_f_block(B, Fdim, C, S, itemsize, f_block=None):
    """Pick the F-block size (a divisor of F) for the (Fblk, C, S) tiles."""
    if f_block is not None:
        f_block = int(f_block)
        if Fdim % f_block != 0:
            raise ValueError("f_block must divide the filter dimension")
        return f_block
    # ≤ ~12 MiB for one in+out tile pair -> ≤ ~24 MiB live double-buffered.
    budget = 12 * 1024 * 1024
    per_f = 2 * C * S * itemsize  # one (C,S) input slab + one output slab per filter
    max_f = max(1, budget // per_f)
    fb = 1
    for d in range(1, Fdim + 1):
        if Fdim % d == 0 and d <= max_f:
            fb = d
    # Keep >= 2 grid steps so the "parallel" axes can shard across v7x's two TCs.
    if B == 1 and fb == Fdim and Fdim > 1:
        for d in range(Fdim - 1, 0, -1):
            if Fdim % d == 0:
                fb = d
                break
    return fb


def graph_convolution_forward(x, adj, out_features, *, f_block=None):
    """out[b,f,c,s] = elu(sum_e adj[c,e] * x[b,f,e,s]);  x.shape[1] == out_features."""
    B, Fdim, C, S = x.shape
    if Fdim != out_features:
        raise ValueError("x.shape[1] must equal out_features (required by the torch reshape)")
    if adj.shape != (C, C):
        raise ValueError("adj must be (C, C), acting on dim 2 of x")

    out_dtype = jnp.result_type(x.dtype, adj.dtype)
    itemsize = jnp.dtype(out_dtype).itemsize
    fb = _auto_f_block(B, Fdim, C, S, itemsize, f_block)

    grid = (B, Fdim // fb)  # F-blocks innermost -> contiguous HBM walk per batch

    # NOTE: for extreme shapes (tiny F, huge B) one would additionally block the
    # batch axis into the tile to keep per-step tiles MiB-scale; not needed here.
    return pl.pallas_call(
        _gcn_agg_elu_kernel,
        out_shape=jax.ShapeDtypeStruct((B, Fdim, C, S), out_dtype),
        grid=grid,
        in_specs=[
            # adj: constant index_map -> fetched once, held in VMEM (loop-invariant).
            pl.BlockSpec((C, C), lambda b, fi: (0, 0)),
            # x: native-layout contiguous (1, Fblk, C, S) slab, batch dim squeezed.
            pl.BlockSpec((None, fb, C, S), lambda b, fi: (b, fi, 0, 0)),
        ],
        out_specs=pl.BlockSpec((None, fb, C, S), lambda b, fi: (b, fi, 0, 0)),
        compiler_params=pltpu.CompilerParams(
            dimension_semantics=("parallel", "parallel"),
            vmem_limit_bytes=48 * 1024 * 1024,
        ),
    )(adj, x)


class GraphConvolutionPallas:
    """Mirrors GraphConvolution.__init__; __call__ runs the Pallas forward.

    Like the PyTorch module, `weight` and `bias` exist but are NOT used in forward().
    """

    def __init__(self, in_features, out_features, bias=True, key=None):
        self.in_features = in_features
        self.out_features = out_features
        key = jax.random.PRNGKey(0) if key is None else key
        limit = 1.414 * (6.0 / (in_features + out_features)) ** 0.5  # xavier_uniform_, gain=1.414
        self.weight = jax.random.uniform(
            key, (in_features, out_features), jnp.float32, -limit, limit)
        self.bias = jnp.zeros((1, 1, out_features), jnp.float32) if bias else None

    def __call__(self, x, adj):
        return graph_convolution_forward(x, adj, self.out_features)


def ref_forward(x, adj, out_features):
    """Pure-JAX reference matching the PyTorch forward exactly."""
    B, Fdim, C, S = x.shape
    y = jnp.transpose(x, (0, 2, 3, 1)).reshape(B, C, S * Fdim)
    y = jax.nn.elu(jnp.matmul(adj, y, precision=jax.lax.Precision.HIGHEST))
    y = y.reshape(B, C, S, out_features)
    return jnp.transpose(y, (0, 3, 1, 2))


if __name__ == "__main__":
    key = jax.random.PRNGKey(0)
    kx, ka, kx2, ka2 = jax.random.split(key, 4)

    # Config 1: small shapes implied by the module
    # (batch=2, filter=out_features=4, channel(graph nodes)=16, samples=16)
    # -> grid (2, 1): two parallel steps, tile = (4, 16, 16).
    B, Fdim, C, S = 2, 4, 16, 16
    x = jax.random.normal(kx, (B, Fdim, C, S), jnp.float32)
    adj = jax.random.uniform(ka, (C, C), jnp.float32)
    adj = adj / jnp.sum(adj, axis=1, keepdims=True)      # row-normalized adjacency

    layer = GraphConvolutionPallas(in_features=8, out_features=Fdim, bias=True, key=key)
    out = layer(x, adj)
    jax.block_until_ready(out)
    ref = ref_forward(x, adj, Fdim)
    assert out.shape == (B, Fdim, C, S)
    assert jnp.allclose(out, ref, atol=1e-4, rtol=1e-4), "config 1 mismatch"

    # Config 2: lane-dense samples axis (S = 128) and a multi-batch grid (4, 1).
    B2, F2, C2, S2 = 4, 8, 32, 128
    x2 = jax.random.normal(kx2, (B2, F2, C2, S2), jnp.float32)
    adj2 = jax.random.uniform(ka2, (C2, C2), jnp.float32)
    adj2 = adj2 / jnp.sum(adj2, axis=1, keepdims=True)
    out2 = graph_convolution_forward(x2, adj2, F2)
    jax.block_until_ready(out2)
    ref2 = ref_forward(x2, adj2, F2)
    assert out2.shape == (B2, F2, C2, S2)
    assert jnp.allclose(out2, ref2, atol=1e-4, rtol=1e-4), "config 2 mismatch"

    print("KERNEL_OK")
</pallas_src>

<mosaic_0001>
module attributes {stable_mosaic.version = 11 : i64} {
  func.func @_gcn_agg_elu_kernel(%arg0: i32, %arg1: i32, %arg2: memref<16x16xf32, #tpu.memory_space<vmem>>, %arg3: memref<1x4x16x16xf32, #tpu.memory_space<vmem>>, %arg4: memref<1x4x16x16xf32, #tpu.memory_space<vmem>>) attributes {dimension_semantics = [#tpu.dimension_semantics<parallel>, #tpu.dimension_semantics<parallel>], iteration_bounds = array<i64: 2, 1>, scalar_prefetch = 0 : i64, scratch_operands = 0 : i64, tpu.core_type = #tpu.core_type<tc>, window_params = [{pipeline_mode = #tpu.pipeline_mode<synchronous>, transform_indices = @transform_0, window_bounds = array<i64: 16, 16>}, {transform_indices = @transform_1, window_bounds = array<i64: 1, 4, 16, 16>}, {transform_indices = @transform_2, window_bounds = array<i64: 1, 4, 16, 16>}]} {
    %c0 = arith.constant 0 : index
    %c0_0 = arith.constant 0 : index
    %0 = vector.load %arg2[%c0, %c0_0] : memref<16x16xf32, #tpu.memory_space<vmem>>, vector<16x16xf32>
    %c0_i32 = arith.constant 0 : i32
    %c4_i32 = arith.constant 4 : i32
    %1 = arith.addi %c0_i32, %c4_i32 : i32
    %c1_i32 = arith.constant 1 : i32
    scf.for %arg5 = %c0_i32 to %1 step %c1_i32  : i32 {
      %c0_2 = arith.constant 0 : index
      %2 = arith.index_cast %arg5 : i32 to index
      %c0_3 = arith.constant 0 : index
      %c0_4 = arith.constant 0 : index
      %3 = vector.load %arg3[%c0_2, %2, %c0_3, %c0_4] : memref<1x4x16x16xf32, #tpu.memory_space<vmem>>, vector<1x1x16x16xf32>
      %4 = vector.shape_cast %3 : vector<1x1x16x16xf32> to vector<16x16xf32>
      %cst = arith.constant dense<0.000000e+00> : vector<16x16xf32>
      %5 = tpu.matmul %0, %4, %cst {dimension_numbers = #tpu.dot_dimension_numbers<[1], [0], [0], [1], [0, 0, 1, 1], [], []>} : vector<16x16xf32>, vector<16x16xf32>, vector<16x16xf32> -> vector<16x16xf32>
      %cst_5 = arith.constant 0.000000e+00 : f32
      %6 = vector.broadcast %cst_5 : f32 to vector<16x16xf32>
      %7 = arith.minimumf %5, %6 : vector<16x16xf32>
      %8 = math.exp %7 : vector<16x16xf32>
      %cst_6 = arith.constant 1.000000e+00 : f32
      %9 = vector.broadcast %cst_6 : f32 to vector<16x16xf32>
      %10 = arith.subf %8, %9 : vector<16x16xf32>
      %cst_7 = arith.constant 0.000000e+00 : f32
      %11 = vector.broadcast %cst_7 : f32 to vector<16x16xf32>
      %12 = arith.cmpf ogt, %5, %11 : vector<16x16xf32>
      %13 = arith.select %12, %5, %10 : vector<16x16xi1>, vector<16x16xf32>
      %c0_8 = arith.constant 0 : index
      %14 = arith.index_cast %arg5 : i32 to index
      %c0_9 = arith.constant 0 : index
      %c0_10 = arith.constant 0 : index
      %15 = vector.load %arg4[%c0_8, %14, %c0_9, %c0_10] : memref<1x4x16x16xf32, #tpu.memory_space<vmem>>, vector<1x1x16x16xf32>
      %16 = vector.shape_cast %15 : vector<1x1x16x16xf32> to vector<16x16xf32>
      %17 = vector.shape_cast %13 : vector<16x16xf32> to vector<1x1x16x16xf32>
      tpu.vector_store %arg4[%c0_8, %14, %c0_9, %c0_10], %17 {strides = array<i32>} : memref<1x4x16x16xf32, #tpu.memory_space<vmem>>, vector<1x1x16x16xf32>,
    }
    %c4_i32_1 = arith.constant 4 : i32
    return
  }
  func.func @transform_0(%arg0: i32, %arg1: i32) -> (i32, i32) {
    %c0_i32 = arith.constant 0 : i32
    %c0_i32_0 = arith.constant 0 : i32
    %c0_i32_1 = arith.constant 0 : i32
    return %c0_i32, %c0_i32_0 : i32, i32
  }
  func.func @transform_1(%arg0: i32, %arg1: i32) -> (i32, i32, i32, i32) {
    %c0_i32 = arith.constant 0 : i32
    %c0_i32_0 = arith.constant 0 : i32
    %c0_i32_1 = arith.constant 0 : i32
    return %arg0, %arg1, %c0_i32, %c0_i32_0 : i32, i32, i32, i32
  }
  func.func @transform_2(%arg0: i32, %arg1: i32) -> (i32, i32, i32, i32) {
    %c0_i32 = arith.constant 0 : i32
    %c0_i32_0 = arith.constant 0 : i32
    %c0_i32_1 = arith.constant 0 : i32
    return %arg0, %arg1, %c0_i32, %c0_i32_0 : i32, i32, i32, i32
  }
}

</mosaic_0001>

<llo_original>
// kernel: tpu_custom_call.1
$region0: #{tpu_custom_call.1}
  #allocation0 [shape = 'u32[]', space=smem, size = 0x4, offset = 0x4, fixed_abs, tag = 'smem constant byte address 0x4 - core index']
  #allocation1 [shape = 'u32[72,128]{1,0:T(1,128)}', space=vmem, size = 0x9000, scoped, tag = 'internal scratch']
  %s0 = inlined_call_operand.hbm [shape: f32[16,16], index: 0, kind: input, shape index: {}]
  %s1 = inlined_call_operand.hbm [shape: f32[2,4,16,16], index: 1, kind: input, shape index: {}]
  %s2 = inlined_call_operand.hbm [shape: f32[2,4,16,16], index: 2, kind: output, shape index: {}]
  %s3 = sld [smem:[#allocation0]]
  $region56: #{tpu_custom_call.1} parent=0
    _
  %s5 = ssub.s32 1, %s3
  %s6 = scalar_select 0, %s5, %s3
  $region1: #{tpu_custom_call.1} parent=0
    #allocation2 [shape = 'u8[8192]{0}', space=vmem, size = 0x2000, scoped, tag = 'input window, operand 0, single buffered']
    #allocation3 [shape = 's32[2]{0}', space=sflag, size = 0x8, scoped, tag = 'scoped memory for tpu_custom_call.1']
    #allocation4 [shape = 's32[2]{0}', space=sflag, size = 0x8, scoped, tag = 'scoped memory for tpu_custom_call.1']
    #allocation5 [shape = 'u8[65536]{0}', space=vmem, size = 0x10000, scoped, tag = 'input window, operand 1']
    #allocation6 [shape = 's32[2]{0}', space=sflag, size = 0x8, scoped, tag = 'scoped memory for tpu_custom_call.1']
    #allocation7 [shape = 'u8[65536]{0}', space=vmem, size = 0x10000, scoped, tag = 'output window, operand 0']
    %7 = vsyncpa [#allocation3], 0
    %8 = vsyncpa [#allocation6], 0
    %s9 = scalar_lea.sflag [#allocation6], 1
    %10 = vsyncpa %s9, 0
    %11 = vsyncpa [#allocation4], 0
    %s12 = scalar_lea.sflag [#allocation4], 1
    %13 = vsyncpa %s12, 0
    loop: start=0, step=1, limit=4
    $region2: #{tpu_custom_call.1} parent=1 // loop_pre_header
      _
    $region3: #{tpu_custom_call.1} parent=1 // loop_header
      %s15 = sphi 0, %s19
      %p16 = scmp.ge.s32.totalorder %s15, 4
      %s22 = sphi 0, %s34
      %s23 = sphi 0, %s30
      %s24 = sphi 0, %s22
      %s25 = sphi 0, %s23
      %s26 = sphi 0, %s24
      %s27 = sphi 0, %s25
      %s35 = sphi 0, %s35
      %s37 = sphi 0, %s35
      %s38 = sphi 0, %s37
      %s52 = sphi 0, %s38
      %s60 = sphi 0, %s62
      %s63 = sphi 0, %s60
      %s64 = sphi 0, %s63
      %s80 = sphi 0, %s64
      %s88 = sphi 0, %s90
      %s91 = sphi 0, %s88
      %s92 = sphi 0, %s91
      %s108 = sphi 0, %s92
    $region4: #{tpu_custom_call.1} parent=1 // loop_header_branch
      %18 = sbr.rel (%p16) target = $region8
    $region5: #{tpu_custom_call.1} parent=1 // loop_body
      %s20 = ssub.s32 %s15, 1
      %s21 = ssub.s32 %s15, 2
      %s28 = sadd.s32 1, %s23
      %p29 = scmp.ge.s32.totalorder %s28, 1
      %s30 = scalar_select %p29, 0, %s28
      %s31 = sadd.s32 1, %s22
      %s32 = scalar_select %p29, %s31, %s22
      %p33 = scmp.ge.s32.totalorder %s32, 2
      %s34 = scalar_select %p33, 0, %s32
      %s36 = sadd.s32 %s35, 1
      %p39 = scmp.eq.s32.totalorder %s15, 1
      %p40 = scmp.ne.s32.totalorder %s35, %s37
      %p41 = scmp.eq.s32.totalorder %s15, 0
      %p42 = por %p40, %p41
      %p43 = scmp.ne.s32.totalorder %s35, %s37
      %p44 = scmp.eq.s32.totalorder %s20, 1
      %p45 = por %p43, %p44
      %p46 = scmp.ne.s32.totalorder %s37, %s38
      %p47 = scmp.eq.s32.totalorder %s20, 0
      %p48 = por %p46, %p47
      %p49 = scmp.ne.s32.totalorder %s37, %s38
      %p50 = scmp.eq.s32.totalorder %s21, 1
      %p51 = por %p49, %p50
      %p53 = scmp.ne.s32.totalorder %s38, %s52
      %p54 = scmp.eq.s32.totalorder %s21, 0
      %p55 = por %p53, %p54
      %s56 = ssub.s32 %s22, %s34
      %s57 = ssub.s32 %s23, %s30
      %s58 = sor.u32 %s56, %s57
      %p59 = scmp.eq.s32.totalorder %s58, 0
      %s61 = sadd.s32 %s60, 1
      %s62 = scalar_select %p59, %s60, %s61
      %p65 = pneg %p59
      %p66 = scmp.eq.s32.totalorder %s15, 1
      %p67 = por %p65, %p66
      %p68 = scmp.ne.s32.totalorder %s60, %s63
      %p69 = scmp.eq.s32.totalorder %s15, 0
      %p70 = por %p68, %p69
      %p71 = scmp.ne.s32.totalorder %s60, %s63
      %p72 = scmp.eq.s32.totalorder %s20, 1
      %p73 = por %p71, %p72
      %p74 = scmp.ne.s32.totalorder %s63, %s64
      %p75 = scmp.eq.s32.totalorder %s20, 0
      %p76 = por %p74, %p75
      %p77 = scmp.ne.s32.totalorder %s63, %s64
      %p78 = scmp.eq.s32.totalorder %s21, 1
      %p79 = por %p77, %p78
      %p81 = scmp.ne.s32.totalorder %s64, %s80
      %p82 = scmp.eq.s32.totalorder %s21, 0
      %p83 = por %p81, %p82
      %s84 = ssub.s32 %s22, %s34
      %s85 = ssub.s32 %s23, %s30
      %s86 = sor.u32 %s84, %s85
      %p87 = scmp.eq.s32.totalorder %s86, 0
      %s89 = sadd.s32 %s88, 1
      %s90 = scalar_select %p87, %s88, %s89
      %p93 = pneg %p87
      %p94 = scmp.eq.s32.totalorder %s15, 1
      %p95 = por %p93, %p94
      %p96 = scmp.ne.s32.totalorder %s88, %s91
      %p97 = scmp.eq.s32.totalorder %s15, 0
      %p98 = por %p96, %p97
      %p99 = scmp.ne.s32.totalorder %s88, %s91
      %p100 = scmp.eq.s32.totalorder %s20, 1
      %p101 = por %p99, %p100
      %p102 = scmp.ne.s32.totalorder %s91, %s92
      %p103 = scmp.eq.s32.totalorder %s20, 0
      %p104 = por %p102, %p103
      %p105 = scmp.ne.s32.totalorder %s91, %s92
      %p106 = scmp.eq.s32.totalorder %s21, 1
      %p107 = por %p105, %p106
      %p109 = scmp.ne.s32.totalorder %s92, %s108
      %p110 = scmp.eq.s32.totalorder %s21, 0
      %p111 = por %p109, %p110
      %p112 = scmp.le.s32.totalorder 1, %s15
      %p113 = scmp.lt.s32.totalorder %s15, 3
      %p114 = pnand %p112, %p113
      %p115 = pneg %p114
      // Predicated region
      $region9: #{tpu_custom_call.1} parent=5 // pred_check
        _
      $region10: #{tpu_custom_call.1} parent=5 // pred_check_branch
        %117 = sbr.rel (%p114) target = $region12
      $region11: #{tpu_custom_call.1} parent=5 // pred_region
        %s118 = ssub.s32 %s15, 1
        // Predicated region
        $region13: #{tpu_custom_call.1} parent=11 // pred_check
          %p119 = pneg %p48
        $region14: #{tpu_custom_call.1} parent=11 // pred_check_branch
          %121 = sbr.rel (%p119) target = $region16
        $region15: #{tpu_custom_call.1} parent=11 // pred_region
          %123 = vsyncadd [#allocation3], 0
          %s124 = sshll.u32 %s0, 4
          %s125 = int_to_ptr.hbm [resolvable:$true] %s124
          %s126 = sshll.u32 [#allocation2], 4
          %s127 = int_to_ptr.vmem [resolvable:$true] %s126
          %132 = dma.hbm_to_vmem [thread:$0]  %s125, 256, %s127, [#allocation3], 128, 128, 8
        $region16: #{tpu_custom_call.1} parent=11 // pred_fallthru
          _
      $region12: #{tpu_custom_call.1} parent=5 // pred_fallthru
        _
      %p133 = scmp.lt.s32.totalorder %s15, 2
      // Predicated region
      $region17: #{tpu_custom_call.1} parent=5 // pred_check
        %p134 = pneg %p133
      $region18: #{tpu_custom_call.1} parent=5 // pred_check_branch
        %136 = sbr.rel (%p134) target = $region20
      $region19: #{tpu_custom_call.1} parent=5 // pred_region
        // Predicated region
        $region21: #{tpu_custom_call.1} parent=19 // pred_check
          %p137 = pneg %p70
        $region22: #{tpu_custom_call.1} parent=19 // pred_check_branch
          %139 = sbr.rel (%p137) target = $region24
        $region23: #{tpu_custom_call.1} parent=19 // pred_region
          %s140 = sand.u32 %s60, 1
          %s141 = scalar_lea.sflag [#allocation6], %s140
          %s142 = sand.u32 %s60, 1
          %s143 = smul.addr %s142, 64
          %s144 = scalar_lea.vmem [#allocation5], %s143
          %s145 = smul.u32 4, %s23
          %147 = vsyncadd %s141, 0
          %s148 = smul.addr %s145, 2
          %s149 = smul.addr %s22, 8
          %s150 = sadd.s32 %s148, %s149
          %s151 = smul.addr %s150, 8
          %s152 = scalar_lea.hbm %s1, %s151
          %s153 = sshll.u32 %s152, 4
          %s154 = int_to_ptr.hbm [resolvable:$true] %s153
          %s155 = sshll.u32 %s144, 4
          %s156 = int_to_ptr.vmem [resolvable:$true] %s155
          %161 = dma.hbm_to_vmem [thread:$0]  %s154, 1024, %s156, %s141, 128, 128, 8
        $region24: #{tpu_custom_call.1} parent=19 // pred_fallthru
          _
      $region20: #{tpu_custom_call.1} parent=5 // pred_fallthru
        _
      %p162 = scmp.le.s32.totalorder 1, %s15
      %p163 = scmp.lt.s32.totalorder %s15, 3
      %p164 = pnand %p162, %p163
      %p165 = pneg %p164
      // Predicated region
      $region25: #{tpu_custom_call.1} parent=5 // pred_check
        _
      $region26: #{tpu_custom_call.1} parent=5 // pred_check_branch
        %167 = sbr.rel (%p164) target = $region28
      $region27: #{tpu_custom_call.1} parent=5 // pred_region
        %s168 = ssub.s32 %s15, 1
        // Predicated region
        $region29: #{tpu_custom_call.1} parent=27 // pred_check
          %p169 = pneg %p48
        $region30: #{tpu_custom_call.1} parent=27 // pred_check_branch
          %171 = sbr.rel (%p169) target = $region32
        $region31: #{tpu_custom_call.1} parent=27 // pred_region
          %173 = dma.done [#allocation3], 256
        $region32: #{tpu_custom_call.1} parent=27 // pred_fallthru
          _
        %s174 = sand.u32 %s63, 1
        %s175 = scalar_lea.sflag [#allocation6], %s174
        %s176 = sand.u32 %s63, 1
        %s177 = smul.addr %s176, 64
        %s178 = scalar_lea.vmem [#allocation5], %s177
        // Predicated region
        $region33: #{tpu_custom_call.1} parent=27 // pred_check
          %p179 = pneg %p76
        $region34: #{tpu_custom_call.1} parent=27 // pred_check_branch
          %181 = sbr.rel (%p179) target = $region36
        $region35: #{tpu_custom_call.1} parent=27 // pred_region
          %183 = dma.done %s175, 1024
        $region36: #{tpu_custom_call.1} parent=27 // pred_fallthru
          _
        %p184 = pneg %p48
        %p185 = pneg %p45
        %s186 = sand.u32 %s63, 1
        %s187 = scalar_lea.sflag [#allocation6], %s186
        %s188 = sand.u32 %s63, 1
        %s189 = smul.addr %s188, 64
        %s190 = scalar_lea.vmem [#allocation5], %s189
        %p191 = pneg %p76
        %p192 = pneg %p73
        %p193 = pneg %p104
        %p194 = pneg %p101
        %s195 = sand.u32 %s91, 1
        %s196 = scalar_lea.sflag [#allocation4], %s195
        %s197 = sand.u32 %s91, 1
        %s198 = smul.addr %s197, 64
        %s199 = scalar_lea.vmem [#allocation7], %s198
        %s200 = smul.u32 4, %s25
        %s201 = smul.u32 4, %s25
        %v202 = vld [vmem:[#allocation2] sm:$0xff]
        %v203 = vld [vmem:[#allocation2 + $0x8] sm:$0xff]
        loop: start=0, step=1, limit=4
        $region37: #{tpu_custom_call.1} parent=27 // loop_pre_header
          _
        $region38: #{tpu_custom_call.1} parent=27 // loop_header
          %s205 = sphi 0, %s209
          %p206 = scmp.ge.s32.totalorder %s205, 4
        $region39: #{tpu_custom_call.1} parent=27 // loop_header_branch
          %208 = sbr.rel (%p206) target = $region43
        $region40: #{tpu_custom_call.1} parent=27 // loop_body
          %s210 = smul.u32 %s205, 16
          %s211 = scalar_lea.vmem %s178, %s210 [#allocation5]
          %v212 = vld [vmem:[%s211] sm:$0xff]
          %v213 = vld [vmem:[%s211 + $0x8] sm:$0xff]
          %vm214 = vcmask 130048
          %v216 = vsel %vm214, %v202, 0
          %v219 = vsel %vm214, %v203, 0
          %221 = vmatpush.msra.mxu0 0.0
          %222 = vmatpush.msra.mxu0 0.0
          %223 = vmatpush.msra.mxu0 0.0
          %224 = vmatpush.msra.mxu0 0.0
          %225 = vmatpush.msra.mxu0 0.0
          %226 = vmatpush.msra.mxu0 0.0
          %227 = vmatpush.msra.mxu0 0.0
          %228 = vmatpush.msra.mxu0 0.0
          %229 = vmatpush.msra.mxu0 0.0
          %230 = vmatpush.msra.mxu0 0.0
          %231 = vmatpush.msra.mxu0 0.0
          %232 = vmatpush.msra.mxu0 0.0
          %233 = vmatpush.msra.mxu0 0.0
          %234 = vmatpush.msra.mxu0 0.0
          %235 = vmatpush.msra.mxu0 %v213
          %236 = vmatpush.msra.mxu0 %v212
          %237 = vmatmul.f32.gmra.mxu0 %v216
          %v238 = vpop.f32.mrf.mxu0
          %v239 = vadd.f32 0.0, %v238
          %240 = vmatmul.f32.gmra.mxu0 %v219
          %v241 = vpop.f32.mrf.mxu0
          %v242 = vadd.f32 0.0, %v241
          %243 = vdwg.mxu0
          %v244 = vmin.f32 %v239, 0.0
          %v245 = vmin.f32 %v242, 0.0
          %v246 = vmul.f32 %v244, 1.442695
          %v247 = vpow.pop %v246
          %v248 = vmul.f32 %v245, 1.442695
          %v249 = vpow.pop %v248
          %v250 = vsub.f32 %v247, 1.0
          %v251 = vsub.f32 %v249, 1.0
          %vm252 = vcmp.gt.f32.partialorder %v239, 0.0
          %vm253 = vcmp.gt.f32.partialorder %v242, 0.0
          %v254 = vsel %vm252, %v239, %v250
          %v255 = vsel %vm253, %v242, %v251
          %s256 = scalar_lea.vmem %s199, %s210 [#allocation7]
          %257 = vst.msk [vmem:[%s256] sm:$0xff] %vm214, %v254
          %258 = vst.msk [vmem:[%s256 + $0x8] sm:$0xff] %vm214, %v255
        $region41: #{tpu_custom_call.1} parent=27 // loop_footer
          %s209 = sadd.s32 1, %s205
        $region42: #{tpu_custom_call.1} parent=27 // loop_footer_branch
          %204 = sbr.rel target = $region38
        $region43: #{tpu_custom_call.1} parent=27 // loop_exit
          _
        %s259 = sand.u32 %s91, 1
        %s260 = scalar_lea.sflag [#allocation4], %s259
        %s261 = sand.u32 %s91, 1
        %s262 = smul.addr %s261, 64
        %s263 = scalar_lea.vmem [#allocation7], %s262
        // Predicated region
        $region44: #{tpu_custom_call.1} parent=27 // pred_check
          %p264 = pneg %p101
        $region45: #{tpu_custom_call.1} parent=27 // pred_check_branch
          %266 = sbr.rel (%p264) target = $region47
        $region46: #{tpu_custom_call.1} parent=27 // pred_region
          %s267 = smul.u32 4, %s25
          %269 = vsyncadd %s260, 0
          %s270 = smul.addr %s267, 2
          %s271 = smul.addr %s24, 8
          %s272 = sadd.s32 %s270, %s271
          %s273 = smul.addr %s272, 8
          %s274 = scalar_lea.hbm %s2, %s273
          %s275 = sshll.u32 %s263, 4
          %s276 = int_to_ptr.vmem [resolvable:$true] %s275
          %s277 = sshll.u32 %s274, 4
          %s278 = int_to_ptr.hbm [resolvable:$true] %s277
          %283 = dma.vmem_to_hbm [thread:$0]  %s276, 1024, %s278, %s260, 128, 128, 8
        $region47: #{tpu_custom_call.1} parent=27 // pred_fallthru
          _
      $region28: #{tpu_custom_call.1} parent=5 // pred_fallthru
        _
      %p284 = scmp.le.s32.totalorder 2, %s15
      // Predicated region
      $region48: #{tpu_custom_call.1} parent=5 // pred_check
        %p285 = pneg %p284
      $region49: #{tpu_custom_call.1} parent=5 // pred_check_branch
        %287 = sbr.rel (%p285) target = $region51
      $region50: #{tpu_custom_call.1} parent=5 // pred_region
        %s288 = ssub.s32 %s15, 2
        // Predicated region
        $region52: #{tpu_custom_call.1} parent=50 // pred_check
          %p289 = pneg %p107
        $region53: #{tpu_custom_call.1} parent=50 // pred_check_branch
          %291 = sbr.rel (%p289) target = $region55
        $region54: #{tpu_custom_call.1} parent=50 // pred_region
          %s292 = sand.u32 %s92, 1
          %s293 = scalar_lea.sflag [#allocation4], %s292
          %s294 = sand.u32 %s92, 1
          %s295 = smul.addr %s294, 64
          %s296 = scalar_lea.vmem [#allocation7], %s295
          %298 = dma.done %s293, 1024
        $region55: #{tpu_custom_call.1} parent=50 // pred_fallthru
          _
      $region51: #{tpu_custom_call.1} parent=5 // pred_fallthru
        _
    $region6: #{tpu_custom_call.1} parent=1 // loop_footer
      %s19 = sadd.s32 1, %s15
    $region7: #{tpu_custom_call.1} parent=1 // loop_footer_branch
      %14 = sbr.rel target = $region3
    $region8: #{tpu_custom_call.1} parent=1 // loop_exit
      _
    %299 = vsyncpa [#allocation3], 1
    %s300 = scalar_lea.sflag [#allocation3], 1
    %301 = vsyncpa %s300, 1
    %302 = vsyncpa [#allocation6], 1
    %s303 = scalar_lea.sflag [#allocation6], 1
    %304 = vsyncpa %s303, 1
    %305 = vsyncpa [#allocation4], 1
    %s306 = scalar_lea.sflag [#allocation4], 1
    %307 = vsyncpa %s306, 1

</llo_original>
